<compile_context>
chip_gen: v7x
topology: tpu7x:2x2x1
jax: 0.10.0
libtpu: 0.0.40
codegen_flags: <defaults>
</compile_context>

<pallas_src>
import functools

import jax
import jax.numpy as jnp
from jax.experimental import pallas as pl
from jax.experimental.pallas import tpu as pltpu


# ----------------------------------------------------------------------------
# Kernel 1: fused QKV projection (1x1 convs as matmuls).
# ----------------------------------------------------------------------------
def _proj_kernel(x_this_ref, x_other_ref, w_kv_ref, b_kv_ref, w_q_ref, b_q_ref,
                 q_ref, k_ref, v_ref, *, ci):
    """q = phi(x_other), [k | v] = [theta | g](x_this)."""
    x_t = x_this_ref[0].astype(jnp.bfloat16)     # (TS, C)
    x_o = x_other_ref[0].astype(jnp.bfloat16)    # (TS, C)

    # Fused theta/g projection: one MXU push instead of two.
    kv = jnp.dot(x_t, w_kv_ref[...], preferred_element_type=jnp.float32)
    kv = kv + b_kv_ref[...]                      # (TS, 2*Ci) f32
    q = jnp.dot(x_o, w_q_ref[...], preferred_element_type=jnp.float32)
    q = q + b_q_ref[...]                         # (TS, Ci) f32

    k_ref[0] = kv[:, :ci].astype(k_ref.dtype)    # theta(x_this)
    v_ref[0] = kv[:, ci:].astype(v_ref.dtype)    # g(x_this)
    q_ref[0] = q.astype(q_ref.dtype)             # phi(x_other)


# ----------------------------------------------------------------------------
# Kernel 2: flash-style attention + folded W_z/BN + residual.
# ----------------------------------------------------------------------------
def _flash_attn_kernel(q_ref, k_ref, v_ref, x_res_ref, w_z_ref, b_z_ref,
                       out_ref, m_sc, l_sc, acc_sc,
                       *, k_tile, s_valid, need_mask):
    ki = pl.program_id(2)

    @pl.when(ki == 0)
    def _():
        m_sc[...] = jnp.full_like(m_sc, -jnp.inf)
        l_sc[...] = jnp.zeros_like(l_sc)
        acc_sc[...] = jnp.zeros_like(acc_sc)

    q = q_ref[0]                                 # (TQ, Ci) bf16
    k = k_ref[0]                                 # (TK, Ci) bf16

    # f[i, j] = sum_c phi(x_other)[i, c] * theta(x_this)[j, c]
    # Contract last dims of both operands directly -- no in-kernel transpose.
    s = jax.lax.dot_general(q, k, (((1,), (1,)), ((), ())),
                            preferred_element_type=jnp.float32)   # (TQ, TK) f32

    if need_mask:  # static python bool -- only emitted when S was padded
        k_pos = ki * k_tile + jax.lax.broadcasted_iota(jnp.int32, s.shape, 1)
        s = jnp.where(k_pos < s_valid, s, -jnp.inf)

    # Online softmax (f32 statistics -- v5e-safe).
    m_prev = m_sc[...]                                            # (TQ, 1)
    m_new = jnp.maximum(m_prev, jnp.max(s, axis=-1, keepdims=True))
    alpha = jnp.exp(m_prev - m_new)
    p = jnp.exp(s - m_new)                                        # (TQ, TK) f32

    l_sc[...] = alpha * l_sc[...] + jnp.sum(p, axis=-1, keepdims=True)
    acc_sc[...] = alpha * acc_sc[...] + jnp.dot(
        p.astype(jnp.bfloat16), v_ref[0], preferred_element_type=jnp.float32)
    m_sc[...] = m_new

    @pl.when(ki == pl.num_programs(2) - 1)
    def _():
        # Normalize with an EUP reciprocal instead of a VALU divide.
        y = acc_sc[...] * pl.reciprocal(l_sc[...], approx=True)   # (TQ, Ci)
        # W_z 1x1 conv with BatchNorm folded in (pre-transposed, exact fold),
        # then residual add with the f32 x_this block.
        w_y = jnp.dot(y, w_z_ref[...], preferred_element_type=jnp.float32)
        w_y = w_y + b_z_ref[...]                                  # (TQ, C)
        out_ref[0] = (w_y + x_res_ref[0]).astype(out_ref.dtype)


# ----------------------------------------------------------------------------
# Wrapper
# ----------------------------------------------------------------------------
def _round_up(x, m):
    return ((x + m - 1) // m) * m


def _bn_fold(params, eps=1e-5):
    scale = params["bn_gamma"] / jnp.sqrt(params["bn_var"] + eps)
    shift = params["bn_beta"] - params["bn_mean"] * scale
    return scale, shift


def nl_block_cross(x_this, x_other, params, *, tile=256):
    """Forward of NLBlockND_cross (embedded, dim=3, bn_layer=True).

    x_this, x_other: (N, C, T, H, W) float32.  Returns (N, C, T, H, W) float32.
    `tile` is the query/key tile size along S (256 is VMEM-safe on v5e/v6e/v7x).
    """
    N, C, T, H, W = x_this.shape
    S = T * H * W
    Ci = params["wg"].shape[0]

    # NCTHW -> (N, S, C)
    xt = jnp.transpose(x_this.reshape(N, C, S), (0, 2, 1))
    xo = jnp.transpose(x_other.reshape(N, C, S), (0, 2, 1))

    # Tile selection + zero padding of S to a tile multiple.
    if S < tile:
        tile = _round_up(S, 8)
    s_pad = _round_up(S, tile)
    if s_pad != S:
        pad = ((0, 0), (0, s_pad - S), (0, 0))
        xt_p = jnp.pad(xt, pad)
        xo_p = jnp.pad(xo, pad)
    else:
        xt_p, xo_p = xt, xo
    n_tiles = s_pad // tile

    # Weight prep: all transposes / fusions / BN folding happen ONCE here.
    w_kv = jnp.concatenate([params["wt"].T, params["wg"].T], axis=1)  # (C, 2Ci)
    b_kv = jnp.concatenate([params["bt"], params["bg"]], axis=1)      # (1, 2Ci)
    w_q = params["wp"].T                                              # (C, Ci)
    b_q = params["bp"]                                                # (1, Ci)
    scale, shift = _bn_fold(params)
    w_z = params["wz"].T * scale                                      # (Ci, C)
    b_z = params["bz"] * scale + shift                                # (1, C)

    w_kv_bf = w_kv.astype(jnp.bfloat16)
    w_q_bf = w_q.astype(jnp.bfloat16)

    vmem_limit = 48 * 1024 * 1024   # headroom under v7x's 64 MiB physical VMEM

    # ---- kernel 1: fused QKV projection ------------------------------------
    q, k, v = pl.pallas_call(
        functools.partial(_proj_kernel, ci=Ci),
        out_shape=(
            jax.ShapeDtypeStruct((N, s_pad, Ci), jnp.bfloat16),   # q
            jax.ShapeDtypeStruct((N, s_pad, Ci), jnp.bfloat16),   # k
            jax.ShapeDtypeStruct((N, s_pad, Ci), jnp.bfloat16),   # v
        ),
        grid_spec=pltpu.PrefetchScalarGridSpec(
            num_scalar_prefetch=0,
            grid=(N, n_tiles),
            in_specs=[
                pl.BlockSpec((1, tile, C), lambda b, i: (b, i, 0)),   # x_this
                pl.BlockSpec((1, tile, C), lambda b, i: (b, i, 0)),   # x_other
                pl.BlockSpec((C, 2 * Ci), lambda b, i: (0, 0)),       # W_kv
                pl.BlockSpec((1, 2 * Ci), lambda b, i: (0, 0)),       # b_kv
                pl.BlockSpec((C, Ci), lambda b, i: (0, 0)),           # W_q
                pl.BlockSpec((1, Ci), lambda b, i: (0, 0)),           # b_q
            ],
            out_specs=[
                pl.BlockSpec((1, tile, Ci), lambda b, i: (b, i, 0)),
                pl.BlockSpec((1, tile, Ci), lambda b, i: (b, i, 0)),
                pl.BlockSpec((1, tile, Ci), lambda b, i: (b, i, 0)),
            ],
        ),
        compiler_params=pltpu.CompilerParams(
            dimension_semantics=("parallel", "parallel"),
            vmem_limit_bytes=vmem_limit,
        ),
    )(xt_p, xo_p, w_kv_bf, b_kv, w_q_bf, b_q)

    # ---- kernel 2: flash attention + W_z/BN + residual ----------------------
    out = pl.pallas_call(
        functools.partial(_flash_attn_kernel, k_tile=tile, s_valid=S,
                          need_mask=(s_pad != S)),
        out_shape=jax.ShapeDtypeStruct((N, s_pad, C), jnp.float32),
        grid_spec=pltpu.PrefetchScalarGridSpec(
            num_scalar_prefetch=0,
            grid=(N, n_tiles, n_tiles),
            in_specs=[
                pl.BlockSpec((1, tile, Ci), lambda b, qi, ki: (b, qi, 0)),  # q
                pl.BlockSpec((1, tile, Ci), lambda b, qi, ki: (b, ki, 0)),  # k
                pl.BlockSpec((1, tile, Ci), lambda b, qi, ki: (b, ki, 0)),  # v
                pl.BlockSpec((1, tile, C), lambda b, qi, ki: (b, qi, 0)),   # residual
                pl.BlockSpec((Ci, C), lambda b, qi, ki: (0, 0)),            # W_z folded
                pl.BlockSpec((1, C), lambda b, qi, ki: (0, 0)),             # b_z folded
            ],
            out_specs=pl.BlockSpec((1, tile, C), lambda b, qi, ki: (b, qi, 0)),
            scratch_shapes=[
                pltpu.VMEM((tile, 1), jnp.float32),    # running max
                pltpu.VMEM((tile, 1), jnp.float32),    # running sum
                pltpu.VMEM((tile, Ci), jnp.float32),   # output accumulator
            ],
        ),
        compiler_params=pltpu.CompilerParams(
            dimension_semantics=("parallel", "parallel", "arbitrary"),
            vmem_limit_bytes=vmem_limit,
        ),
    )(q, k, v, xt_p, w_z, b_z)

    out = out[:, :S, :]                                 # drop padded rows
    return jnp.transpose(out, (0, 2, 1)).reshape(N, C, T, H, W)


# ----------------------------------------------------------------------------
# Pure-JAX f32 reference mirroring the PyTorch forward (embedded mode).
# ----------------------------------------------------------------------------
def nl_block_cross_reference(x_this, x_other, params):
    N, C, T, H, W = x_this.shape
    S = T * H * W
    xt = jnp.transpose(x_this.reshape(N, C, S), (0, 2, 1))    # (N, S, C)
    xo = jnp.transpose(x_other.reshape(N, C, S), (0, 2, 1))

    g_x = jnp.einsum("nsc,ic->nsi", xt, params["wg"]) + params["bg"]
    theta = jnp.einsum("nsc,ic->nsi", xt, params["wt"]) + params["bt"]
    phi = jnp.einsum("nsc,ic->nsi", xo, params["wp"]) + params["bp"]

    f = jnp.einsum("nsi,nti->nst", phi, theta)                # (N, S, S)
    f_div_c = jax.nn.softmax(f, axis=-1)
    y = jnp.einsum("nst,nti->nsi", f_div_c, g_x)              # (N, S, Ci)

    scale, shift = _bn_fold(params)
    w_y = jnp.einsum("nsi,ci->nsc", y, params["wz"]) + params["bz"]
    w_y = w_y * scale + shift
    z = w_y + xt
    return jnp.transpose(z, (0, 2, 1)).reshape(N, C, T, H, W)


def make_params(key, in_channels, inter_channels):
    C, Ci = in_channels, inter_channels
    keys = jax.random.split(key, 12)
    params = {
        # g / theta / phi : (Ci, C) weights of the 1x1x1 convs
        "wg": 0.1 * jax.random.normal(keys[0], (Ci, C), jnp.float32),
        "bg": 0.05 * jax.random.normal(keys[1], (1, Ci), jnp.float32),
        "wt": 0.1 * jax.random.normal(keys[2], (Ci, C), jnp.float32),
        "bt": 0.05 * jax.random.normal(keys[3], (1, Ci), jnp.float32),
        "wp": 0.1 * jax.random.normal(keys[4], (Ci, C), jnp.float32),
        "bp": 0.05 * jax.random.normal(keys[5], (1, Ci), jnp.float32),
        # W_z conv (Ci -> C)
        "wz": 0.1 * jax.random.normal(keys[6], (C, Ci), jnp.float32),
        "bz": 0.05 * jax.random.normal(keys[7], (1, C), jnp.float32),
        # BatchNorm (eval-mode affine).  NOTE: at PyTorch __init__ gamma=beta=0,
        # which makes the W_z branch contribute exactly zero; non-trivial values
        # are used here so the test exercises the full datapath.
        "bn_gamma": 0.5 + 0.1 * jax.random.normal(keys[8], (1, C), jnp.float32),
        "bn_beta": 0.1 * jax.random.normal(keys[9], (1, C), jnp.float32),
        "bn_mean": 0.1 * jax.random.normal(keys[10], (1, C), jnp.float32),
        "bn_var": 1.0 + jax.random.uniform(keys[11], (1, C), dtype=jnp.float32,
                                           minval=0.0, maxval=0.5),
    }
    return params


if __name__ == "__main__":
    key = jax.random.PRNGKey(0)
    k_x1, k_x2, k_p = jax.random.split(key, 3)

    # dimension=3: (N, C, T, H, W); in_channels=4 -> inter_channels=2
    # S = T*H*W = 112 (not a tile multiple) with tile=64 exercises multi-tile
    # online softmax AND the padded-key masking path.
    N, C, T, H, W = 2, 4, 2, 7, 8
    Ci = C // 2

    x_this = jax.random.normal(k_x1, (N, C, T, H, W), jnp.float32)
    x_other = jax.random.normal(k_x2, (N, C, T, H, W), jnp.float32)
    params = make_params(k_p, C, Ci)

    z = nl_block_cross(x_this, x_other, params, tile=64)
    z = jax.block_until_ready(z)

    z_ref = nl_block_cross_reference(x_this, x_other, params)
    assert z.shape == x_this.shape
    max_err = float(jnp.max(jnp.abs(z - z_ref)))
    # bf16 MXU inputs + approx reciprocal => slightly loosened tolerance.
    assert jnp.allclose(z, z_ref, atol=2e-2, rtol=2e-2), (
        f"mismatch vs reference (max abs err {max_err})")
    print("KERNEL_OK")
</pallas_src>

<mosaic_0001>
module attributes {stable_mosaic.version = 11 : i64} {
  func.func @_proj_kernel(%arg0: i32, %arg1: i32, %arg2: memref<1x64x4xf32, #tpu.memory_space<vmem>>, %arg3: memref<1x64x4xf32, #tpu.memory_space<vmem>>, %arg4: memref<4x4xbf16, #tpu.memory_space<vmem>>, %arg5: memref<1x4xf32, #tpu.memory_space<vmem>>, %arg6: memref<4x2xbf16, #tpu.memory_space<vmem>>, %arg7: memref<1x2xf32, #tpu.memory_space<vmem>>, %arg8: memref<1x64x2xbf16, #tpu.memory_space<vmem>>, %arg9: memref<1x64x2xbf16, #tpu.memory_space<vmem>>, %arg10: memref<1x64x2xbf16, #tpu.memory_space<vmem>>) attributes {dimension_semantics = [#tpu.dimension_semantics<parallel>, #tpu.dimension_semantics<parallel>], iteration_bounds = array<i64: 2, 2>, scalar_prefetch = 0 : i64, scratch_operands = 0 : i64, tpu.core_type = #tpu.core_type<tc>, window_params = [{transform_indices = @transform_0, window_bounds = array<i64: 1, 64, 4>}, {transform_indices = @transform_1, window_bounds = array<i64: 1, 64, 4>}, {pipeline_mode = #tpu.pipeline_mode<synchronous>, transform_indices = @transform_2, window_bounds = array<i64: 4, 4>}, {pipeline_mode = #tpu.pipeline_mode<synchronous>, transform_indices = @transform_3, window_bounds = array<i64: 1, 4>}, {pipeline_mode = #tpu.pipeline_mode<synchronous>, transform_indices = @transform_4, window_bounds = array<i64: 4, 2>}, {pipeline_mode = #tpu.pipeline_mode<synchronous>, transform_indices = @transform_5, window_bounds = array<i64: 1, 2>}, {transform_indices = @transform_6, window_bounds = array<i64: 1, 64, 2>}, {transform_indices = @transform_7, window_bounds = array<i64: 1, 64, 2>}, {transform_indices = @transform_8, window_bounds = array<i64: 1, 64, 2>}]} {
    %c0 = arith.constant 0 : index
    %c0_0 = arith.constant 0 : index
    %c0_1 = arith.constant 0 : index
    %0 = vector.load %arg2[%c0, %c0_0, %c0_1] : memref<1x64x4xf32, #tpu.memory_space<vmem>>, vector<1x64x4xf32>
    %1 = vector.shape_cast %0 : vector<1x64x4xf32> to vector<64x4xf32>
    %2 = arith.truncf %1 : vector<64x4xf32> to vector<64x4xbf16>
    %c0_2 = arith.constant 0 : index
    %c0_3 = arith.constant 0 : index
    %c0_4 = arith.constant 0 : index
    %3 = vector.load %arg3[%c0_2, %c0_3, %c0_4] : memref<1x64x4xf32, #tpu.memory_space<vmem>>, vector<1x64x4xf32>
    %4 = vector.shape_cast %3 : vector<1x64x4xf32> to vector<64x4xf32>
    %5 = arith.truncf %4 : vector<64x4xf32> to vector<64x4xbf16>
    %c0_5 = arith.constant 0 : index
    %c0_6 = arith.constant 0 : index
    %6 = vector.load %arg4[%c0_5, %c0_6] : memref<4x4xbf16, #tpu.memory_space<vmem>>, vector<4x4xbf16>
    %cst = arith.constant dense<0.000000e+00> : vector<64x4xf32>
    %7 = tpu.matmul %2, %6, %cst {dimension_numbers = #tpu.dot_dimension_numbers<[1], [0], [0], [1], [0, 0, 1, 1], [], []>} : vector<64x4xbf16>, vector<4x4xbf16>, vector<64x4xf32> -> vector<64x4xf32>
    %c0_7 = arith.constant 0 : index
    %c0_8 = arith.constant 0 : index
    %8 = vector.load %arg5[%c0_7, %c0_8] : memref<1x4xf32, #tpu.memory_space<vmem>>, vector<1x4xf32>
    %9 = vector.broadcast %8 : vector<1x4xf32> to vector<64x4xf32>
    %10 = arith.addf %7, %9 : vector<64x4xf32>
    %c0_9 = arith.constant 0 : index
    %c0_10 = arith.constant 0 : index
    %11 = vector.load %arg6[%c0_9, %c0_10] : memref<4x2xbf16, #tpu.memory_space<vmem>>, vector<4x2xbf16>
    %cst_11 = arith.constant dense<0.000000e+00> : vector<64x2xf32>
    %12 = tpu.matmul %5, %11, %cst_11 {dimension_numbers = #tpu.dot_dimension_numbers<[1], [0], [0], [1], [0, 0, 1, 1], [], []>} : vector<64x4xbf16>, vector<4x2xbf16>, vector<64x2xf32> -> vector<64x2xf32>
    %c0_12 = arith.constant 0 : index
    %c0_13 = arith.constant 0 : index
    %13 = vector.load %arg7[%c0_12, %c0_13] : memref<1x2xf32, #tpu.memory_space<vmem>>, vector<1x2xf32>
    %14 = vector.broadcast %13 : vector<1x2xf32> to vector<64x2xf32>
    %15 = arith.addf %12, %14 : vector<64x2xf32>
    %16 = vector.extract_strided_slice %10 {offsets = [0, 0], sizes = [64, 2], strides = [1, 1]} : vector<64x4xf32> to vector<64x2xf32>
    %17 = arith.truncf %16 : vector<64x2xf32> to vector<64x2xbf16>
    %c0_14 = arith.constant 0 : index
    %c0_15 = arith.constant 0 : index
    %c0_16 = arith.constant 0 : index
    %18 = vector.load %arg9[%c0_14, %c0_15, %c0_16] : memref<1x64x2xbf16, #tpu.memory_space<vmem>>, vector<1x64x2xbf16>
    %19 = vector.shape_cast %18 : vector<1x64x2xbf16> to vector<64x2xbf16>
    %20 = vector.shape_cast %17 : vector<64x2xbf16> to vector<1x64x2xbf16>
    tpu.vector_store %arg9[%c0_14, %c0_15, %c0_16], %20 {strides = array<i32>} : memref<1x64x2xbf16, #tpu.memory_space<vmem>>, vector<1x64x2xbf16>,
    %21 = vector.extract_strided_slice %10 {offsets = [0, 2], sizes = [64, 2], strides = [1, 1]} : vector<64x4xf32> to vector<64x2xf32>
    %22 = arith.truncf %21 : vector<64x2xf32> to vector<64x2xbf16>
    %c0_17 = arith.constant 0 : index
    %c0_18 = arith.constant 0 : index
    %c0_19 = arith.constant 0 : index
    %23 = vector.load %arg10[%c0_17, %c0_18, %c0_19] : memref<1x64x2xbf16, #tpu.memory_space<vmem>>, vector<1x64x2xbf16>
    %24 = vector.shape_cast %23 : vector<1x64x2xbf16> to vector<64x2xbf16>
    %25 = vector.shape_cast %22 : vector<64x2xbf16> to vector<1x64x2xbf16>
    tpu.vector_store %arg10[%c0_17, %c0_18, %c0_19], %25 {strides = array<i32>} : memref<1x64x2xbf16, #tpu.memory_space<vmem>>, vector<1x64x2xbf16>,
    %26 = arith.truncf %15 : vector<64x2xf32> to vector<64x2xbf16>
    %c0_20 = arith.constant 0 : index
    %c0_21 = arith.constant 0 : index
    %c0_22 = arith.constant 0 : index
    %27 = vector.load %arg8[%c0_20, %c0_21, %c0_22] : memref<1x64x2xbf16, #tpu.memory_space<vmem>>, vector<1x64x2xbf16>
    %28 = vector.shape_cast %27 : vector<1x64x2xbf16> to vector<64x2xbf16>
    %29 = vector.shape_cast %26 : vector<64x2xbf16> to vector<1x64x2xbf16>
    tpu.vector_store %arg8[%c0_20, %c0_21, %c0_22], %29 {strides = array<i32>} : memref<1x64x2xbf16, #tpu.memory_space<vmem>>, vector<1x64x2xbf16>,
    return
  }
  func.func @transform_0(%arg0: i32, %arg1: i32) -> (i32, i32, i32) {
    %c0_i32 = arith.constant 0 : i32
    %c0_i32_0 = arith.constant 0 : i32
    return %arg0, %arg1, %c0_i32 : i32, i32, i32
  }
  func.func @transform_1(%arg0: i32, %arg1: i32) -> (i32, i32, i32) {
    %c0_i32 = arith.constant 0 : i32
    %c0_i32_0 = arith.constant 0 : i32
    return %arg0, %arg1, %c0_i32 : i32, i32, i32
  }
  func.func @transform_2(%arg0: i32, %arg1: i32) -> (i32, i32) {
    %c0_i32 = arith.constant 0 : i32
    %c0_i32_0 = arith.constant 0 : i32
    %c0_i32_1 = arith.constant 0 : i32
    return %c0_i32, %c0_i32_0 : i32, i32
  }
  func.func @transform_3(%arg0: i32, %arg1: i32) -> (i32, i32) {
    %c0_i32 = arith.constant 0 : i32
    %c0_i32_0 = arith.constant 0 : i32
    %c0_i32_1 = arith.constant 0 : i32
    return %c0_i32, %c0_i32_0 : i32, i32
  }
  func.func @transform_4(%arg0: i32, %arg1: i32) -> (i32, i32) {
    %c0_i32 = arith.constant 0 : i32
    %c0_i32_0 = arith.constant 0 : i32
    %c0_i32_1 = arith.constant 0 : i32
    return %c0_i32, %c0_i32_0 : i32, i32
  }
  func.func @transform_5(%arg0: i32, %arg1: i32) -> (i32, i32) {
    %c0_i32 = arith.constant 0 : i32
    %c0_i32_0 = arith.constant 0 : i32
    %c0_i32_1 = arith.constant 0 : i32
    return %c0_i32, %c0_i32_0 : i32, i32
  }
  func.func @transform_6(%arg0: i32, %arg1: i32) -> (i32, i32, i32) {
    %c0_i32 = arith.constant 0 : i32
    %c0_i32_0 = arith.constant 0 : i32
    return %arg0, %arg1, %c0_i32 : i32, i32, i32
  }
  func.func @transform_7(%arg0: i32, %arg1: i32) -> (i32, i32, i32) {
    %c0_i32 = arith.constant 0 : i32
    %c0_i32_0 = arith.constant 0 : i32
    return %arg0, %arg1, %c0_i32 : i32, i32, i32
  }
  func.func @transform_8(%arg0: i32, %arg1: i32) -> (i32, i32, i32) {
    %c0_i32 = arith.constant 0 : i32
    %c0_i32_0 = arith.constant 0 : i32
    return %arg0, %arg1, %c0_i32 : i32, i32, i32
  }
}

</mosaic_0001>

<llo_original>
// kernel: tpu_custom_call.1
$region0: #{tpu_custom_call.1}
  #allocation0 [shape = 'u32[]', space=smem, size = 0x4, offset = 0x4, fixed_abs, tag = 'smem constant byte address 0x4 - core index']
  #allocation1 [shape = 'u32[144,128]{1,0:T(1,128)}', space=vmem, size = 0x12000, scoped, tag = 'internal scratch']
  %s0 = inlined_call_operand.vmem [shape: f32[2,128,4], index: 0, kind: input, shape index: {}]
  %s1 = inlined_call_operand.vmem [shape: f32[2,128,4], index: 1, kind: input, shape index: {}]
  %s2 = inlined_call_operand.vmem [shape: bf16[4,4], index: 2, kind: input, shape index: {}]
  %s3 = inlined_call_operand.vmem [shape: f32[1,4], index: 3, kind: input, shape index: {}]
  %s4 = inlined_call_operand.vmem [shape: bf16[4,2], index: 4, kind: input, shape index: {}]
  %s5 = inlined_call_operand.vmem [shape: f32[1,2], index: 5, kind: input, shape index: {}]
  %s6 = inlined_call_operand.vmem [shape: bf16[2,128,2], index: 6, kind: output, shape index: {0}]
  %s7 = inlined_call_operand.vmem [shape: bf16[2,128,2], index: 7, kind: output, shape index: {1}]
  %s8 = inlined_call_operand.vmem [shape: bf16[2,128,2], index: 8, kind: output, shape index: {2}]
  %9 = xla_tuple %s6, %s7, %s8
  %s10 = sld [smem:[#allocation0]]
  $region73: #{tpu_custom_call.1} parent=0
    _
  %s12 = ssub.s32 1, %s10
  %s13 = scalar_select 0, %s12, %s10
  loop: start=0, step=1, limit=6
  $region2: #{tpu_custom_call.1} parent=0 // loop_pre_header
    _
  $region3: #{tpu_custom_call.1} parent=0 // loop_header
    %s15 = sphi 0, %s19
    %p16 = scmp.ge.s32.totalorder %s15, 6
    %s22 = sphi 0, %s34
    %s23 = sphi 0, %s30
    %s24 = sphi 0, %s22
    %s25 = sphi 0, %s23
    %s26 = sphi 0, %s24
    %s27 = sphi 0, %s25
    %s39 = sphi 0, %s41
    %s42 = sphi 0, %s39
    %s43 = sphi 0, %s42
    %s59 = sphi 0, %s43
    %s67 = sphi 0, %s69
    %s70 = sphi 0, %s67
    %s71 = sphi 0, %s70
    %s87 = sphi 0, %s71
    %s91 = sphi 0, %s91
    %s93 = sphi 0, %s91
    %s94 = sphi 0, %s93
    %s108 = sphi 0, %s94
    %s112 = sphi 0, %s112
    %s114 = sphi 0, %s112
    %s115 = sphi 0, %s114
    %s129 = sphi 0, %s115
    %s133 = sphi 0, %s133
    %s135 = sphi 0, %s133
    %s136 = sphi 0, %s135
    %s150 = sphi 0, %s136
    %s154 = sphi 0, %s154
    %s156 = sphi 0, %s154
    %s157 = sphi 0, %s156
    %s171 = sphi 0, %s157
    %s179 = sphi 0, %s181
    %s182 = sphi 0, %s179
    %s183 = sphi 0, %s182
    %s199 = sphi 0, %s183
    %s207 = sphi 0, %s209
    %s210 = sphi 0, %s207
    %s211 = sphi 0, %s210
    %s227 = sphi 0, %s211
    %s235 = sphi 0, %s237
    %s238 = sphi 0, %s235
    %s239 = sphi 0, %s238
    %s255 = sphi 0, %s239
  $region4: #{tpu_custom_call.1} parent=0 // loop_header_branch
    %18 = sbr.rel (%p16) target = $region8
  $region5: #{tpu_custom_call.1} parent=0 // loop_body
    %s20 = ssub.s32 %s15, 1
    %s21 = ssub.s32 %s15, 2
    %s28 = sadd.s32 1, %s23
    %p29 = scmp.ge.s32.totalorder %s28, 2
    %s30 = scalar_select %p29, 0, %s28
    %s31 = sadd.s32 1, %s22
    %s32 = scalar_select %p29, %s31, %s22
    %p33 = scmp.ge.s32.totalorder %s32, 2
    %s34 = scalar_select %p33, 0, %s32
    %s35 = ssub.s32 %s22, %s34
    %s36 = ssub.s32 %s23, %s30
    %s37 = sor.u32 %s35, %s36
    %p38 = scmp.eq.s32.totalorder %s37, 0
    %s40 = sadd.s32 %s39, 1
    %s41 = scalar_select %p38, %s39, %s40
    %p44 = pneg %p38
    %p45 = scmp.eq.s32.totalorder %s15, 3
    %p46 = por %p44, %p45
    %p47 = scmp.ne.s32.totalorder %s39, %s42
    %p48 = scmp.eq.s32.totalorder %s15, 0
    %p49 = por %p47, %p48
    %p50 = scmp.ne.s32.totalorder %s39, %s42
    %p51 = scmp.eq.s32.totalorder %s20, 3
    %p52 = por %p50, %p51
    %p53 = scmp.ne.s32.totalorder %s42, %s43
    %p54 = scmp.eq.s32.totalorder %s20, 0
    %p55 = por %p53, %p54
    %p56 = scmp.ne.s32.totalorder %s42, %s43
    %p57 = scmp.eq.s32.totalorder %s21, 3
    %p58 = por %p56, %p57
    %p60 = scmp.ne.s32.totalorder %s43, %s59
    %p61 = scmp.eq.s32.totalorder %s21, 0
    %p62 = por %p60, %p61
    %s63 = ssub.s32 %s22, %s34
    %s64 = ssub.s32 %s23, %s30
    %s65 = sor.u32 %s63, %s64
    %p66 = scmp.eq.s32.totalorder %s65, 0
    %s68 = sadd.s32 %s67, 1
    %s69 = scalar_select %p66, %s67, %s68
    %p72 = pneg %p66
    %p73 = scmp.eq.s32.totalorder %s15, 3
    %p74 = por %p72, %p73
    %p75 = scmp.ne.s32.totalorder %s67, %s70
    %p76 = scmp.eq.s32.totalorder %s15, 0
    %p77 = por %p75, %p76
    %p78 = scmp.ne.s32.totalorder %s67, %s70
    %p79 = scmp.eq.s32.totalorder %s20, 3
    %p80 = por %p78, %p79
    %p81 = scmp.ne.s32.totalorder %s70, %s71
    %p82 = scmp.eq.s32.totalorder %s20, 0
    %p83 = por %p81, %p82
    %p84 = scmp.ne.s32.totalorder %s70, %s71
    %p85 = scmp.eq.s32.totalorder %s21, 3
    %p86 = por %p84, %p85
    %p88 = scmp.ne.s32.totalorder %s71, %s87
    %p89 = scmp.eq.s32.totalorder %s21, 0
    %p90 = por %p88, %p89
    %s92 = sadd.s32 %s91, 1
    %p95 = scmp.eq.s32.totalorder %s15, 3
    %p96 = scmp.ne.s32.totalorder %s91, %s93
    %p97 = scmp.eq.s32.totalorder %s15, 0
    %p98 = por %p96, %p97
    %p99 = scmp.ne.s32.totalorder %s91, %s93
    %p100 = scmp.eq.s32.totalorder %s20, 3
    %p101 = por %p99, %p100
    %p102 = scmp.ne.s32.totalorder %s93, %s94
    %p103 = scmp.eq.s32.totalorder %s20, 0
    %p104 = por %p102, %p103
    %p105 = scmp.ne.s32.totalorder %s93, %s94
    %p106 = scmp.eq.s32.totalorder %s21, 3
    %p107 = por %p105, %p106
    %p109 = scmp.ne.s32.totalorder %s94, %s108
    %p110 = scmp.eq.s32.totalorder %s21, 0
    %p111 = por %p109, %p110
    %s113 = sadd.s32 %s112, 1
    %p116 = scmp.eq.s32.totalorder %s15, 3
    %p117 = scmp.ne.s32.totalorder %s112, %s114
    %p118 = scmp.eq.s32.totalorder %s15, 0
    %p119 = por %p117, %p118
    %p120 = scmp.ne.s32.totalorder %s112, %s114
    %p121 = scmp.eq.s32.totalorder %s20, 3
    %p122 = por %p120, %p121
    %p123 = scmp.ne.s32.totalorder %s114, %s115
    %p124 = scmp.eq.s32.totalorder %s20, 0
    %p125 = por %p123, %p124
    %p126 = scmp.ne.s32.totalorder %s114, %s115
    %p127 = scmp.eq.s32.totalorder %s21, 3
    %p128 = por %p126, %p127
    %p130 = scmp.ne.s32.totalorder %s115, %s129
    %p131 = scmp.eq.s32.totalorder %s21, 0
    %p132 = por %p130, %p131
    %s134 = sadd.s32 %s133, 1
    %p137 = scmp.eq.s32.totalorder %s15, 3
    %p138 = scmp.ne.s32.totalorder %s133, %s135
    %p139 = scmp.eq.s32.totalorder %s15, 0
    %p140 = por %p138, %p139
    %p141 = scmp.ne.s32.totalorder %s133, %s135
    %p142 = scmp.eq.s32.totalorder %s20, 3
    %p143 = por %p141, %p142
    %p144 = scmp.ne.s32.totalorder %s135, %s136
    %p145 = scmp.eq.s32.totalorder %s20, 0
    %p146 = por %p144, %p145
    %p147 = scmp.ne.s32.totalorder %s135, %s136
    %p148 = scmp.eq.s32.totalorder %s21, 3
    %p149 = por %p147, %p148
    %p151 = scmp.ne.s32.totalorder %s136, %s150
    %p152 = scmp.eq.s32.totalorder %s21, 0
    %p153 = por %p151, %p152
    %s155 = sadd.s32 %s154, 1
    %p158 = scmp.eq.s32.totalorder %s15, 3
    %p159 = scmp.ne.s32.totalorder %s154, %s156
    %p160 = scmp.eq.s32.totalorder %s15, 0
    %p161 = por %p159, %p160
    %p162 = scmp.ne.s32.totalorder %s154, %s156
    %p163 = scmp.eq.s32.totalorder %s20, 3
    %p164 = por %p162, %p163
    %p165 = scmp.ne.s32.totalorder %s156, %s157
    %p166 = scmp.eq.s32.totalorder %s20, 0
    %p167 = por %p165, %p166
    %p168 = scmp.ne.s32.totalorder %s156, %s157
    %p169 = scmp.eq.s32.totalorder %s21, 3
    %p170 = por %p168, %p169
    %p172 = scmp.ne.s32.totalorder %s157, %s171
    %p173 = scmp.eq.s32.totalorder %s21, 0
    %p174 = por %p172, %p173
    %s175 = ssub.s32 %s22, %s34
    %s176 = ssub.s32 %s23, %s30
    %s177 = sor.u32 %s175, %s176
    %p178 = scmp.eq.s32.totalorder %s177, 0
    %s180 = sadd.s32 %s179, 1
    %s181 = scalar_select %p178, %s179, %s180
    %p184 = pneg %p178
    %p185 = scmp.eq.s32.totalorder %s15, 3
    %p186 = por %p184, %p185
    %p187 = scmp.ne.s32.totalorder %s179, %s182
    %p188 = scmp.eq.s32.totalorder %s15, 0
    %p189 = por %p187, %p188
    %p190 = scmp.ne.s32.totalorder %s179, %s182
    %p191 = scmp.eq.s32.totalorder %s20, 3
    %p192 = por %p190, %p191
    %p193 = scmp.ne.s32.totalorder %s182, %s183
    %p194 = scmp.eq.s32.totalorder %s20, 0
    %p195 = por %p193, %p194
    %p196 = scmp.ne.s32.totalorder %s182, %s183
    %p197 = scmp.eq.s32.totalorder %s21, 3
    %p198 = por %p196, %p197
    %p200 = scmp.ne.s32.totalorder %s183, %s199
    %p201 = scmp.eq.s32.totalorder %s21, 0
    %p202 = por %p200, %p201
    %s203 = ssub.s32 %s22, %s34
    %s204 = ssub.s32 %s23, %s30
    %s205 = sor.u32 %s203, %s204
    %p206 = scmp.eq.s32.totalorder %s205, 0
    %s208 = sadd.s32 %s207, 1
    %s209 = scalar_select %p206, %s207, %s208
    %p212 = pneg %p206
    %p213 = scmp.eq.s32.totalorder %s15, 3
    %p214 = por %p212, %p213
    %p215 = scmp.ne.s32.totalorder %s207, %s210
    %p216 = scmp.eq.s32.totalorder %s15, 0
    %p217 = por %p215, %p216
    %p218 = scmp.ne.s32.totalorder %s207, %s210
    %p219 = scmp.eq.s32.totalorder %s20, 3
    %p220 = por %p218, %p219
    %p221 = scmp.ne.s32.totalorder %s210, %s211
    %p222 = scmp.eq.s32.totalorder %s20, 0
    %p223 = por %p221, %p222
    %p224 = scmp.ne.s32.totalorder %s210, %s211
    %p225 = scmp.eq.s32.totalorder %s21, 3
    %p226 = por %p224, %p225
    %p228 = scmp.ne.s32.totalorder %s211, %s227
    %p229 = scmp.eq.s32.totalorder %s21, 0
    %p230 = por %p228, %p229
    %s231 = ssub.s32 %s22, %s34
    %s232 = ssub.s32 %s23, %s30
    %s233 = sor.u32 %s231, %s232
    %p234 = scmp.eq.s32.totalorder %s233, 0
    %s236 = sadd.s32 %s235, 1
    %s237 = scalar_select %p234, %s235, %s236
    %p240 = pneg %p234
    %p241 = scmp.eq.s32.totalorder %s15, 3
    %p242 = por %p240, %p241
    %p243 = scmp.ne.s32.totalorder %s235, %s238
    %p244 = scmp.eq.s32.totalorder %s15, 0
    %p245 = por %p243, %p244
    %p246 = scmp.ne.s32.totalorder %s235, %s238
    %p247 = scmp.eq.s32.totalorder %s20, 3
    %p248 = por %p246, %p247
    %p249 = scmp.ne.s32.totalorder %s238, %s239
    %p250 = scmp.eq.s32.totalorder %s20, 0
    %p251 = por %p249, %p250
    %p252 = scmp.ne.s32.totalorder %s238, %s239
    %p253 = scmp.eq.s32.totalorder %s21, 3
    %p254 = por %p252, %p253
    %p256 = scmp.ne.s32.totalorder %s239, %s255
    %p257 = scmp.eq.s32.totalorder %s21, 0
    %p258 = por %p256, %p257
    %p259 = scmp.le.s32.totalorder 1, %s15
    %p260 = scmp.lt.s32.totalorder %s15, 5
    %p261 = pnand %p259, %p260
    %p262 = pneg %p261
    // Predicated region
    $region9: #{tpu_custom_call.1} parent=5 // pred_check
      _
    $region10: #{tpu_custom_call.1} parent=5 // pred_check_branch
      %264 = sbr.rel (%p261) target = $region12
    $region11: #{tpu_custom_call.1} parent=5 // pred_region
      %s265 = ssub.s32 %s15, 1
      // Predicated region
      $region13: #{tpu_custom_call.1} parent=11 // pred_check
        %p266 = pneg %p104
      $region14: #{tpu_custom_call.1} parent=11 // pred_check_branch
        %268 = sbr.rel (%p266) target = $region16
      $region15: #{tpu_custom_call.1} parent=11 // pred_region
        _
      $region16: #{tpu_custom_call.1} parent=11 // pred_fallthru
        _
      // Predicated region
      $region17: #{tpu_custom_call.1} parent=11 // pred_check
        %p269 = pneg %p125
      $region18: #{tpu_custom_call.1} parent=11 // pred_check_branch
        %271 = sbr.rel (%p269) target = $region20
      $region19: #{tpu_custom_call.1} parent=11 // pred_region
        _
      $region20: #{tpu_custom_call.1} parent=11 // pred_fallthru
        _
      // Predicated region
      $region21: #{tpu_custom_call.1} parent=11 // pred_check
        %p272 = pneg %p146
      $region22: #{tpu_custom_call.1} parent=11 // pred_check_branch
        %274 = sbr.rel (%p272) target = $region24
      $region23: #{tpu_custom_call.1} parent=11 // pred_region
        _
      $region24: #{tpu_custom_call.1} parent=11 // pred_fallthru
        _
      // Predicated region
      $region25: #{tpu_custom_call.1} parent=11 // pred_check
        %p275 = pneg %p167
      $region26: #{tpu_custom_call.1} parent=11 // pred_check_branch
        %277 = sbr.rel (%p275) target = $region28
      $region27: #{tpu_custom_call.1} parent=11 // pred_region
        _
      $region28: #{tpu_custom_call.1} parent=11 // pred_fallthru
        _
    $region12: #{tpu_custom_call.1} parent=5 // pred_fallthru
      _
    %p278 = scmp.lt.s32.totalorder %s15, 4
    // Predicated region
    $region29: #{tpu_custom_call.1} parent=5 // pred_check
      %p279 = pneg %p278
    $region30: #{tpu_custom_call.1} parent=5 // pred_check_branch
      %281 = sbr.rel (%p279) target = $region32
    $region31: #{tpu_custom_call.1} parent=5 // pred_region
      // Predicated region
      $region33: #{tpu_custom_call.1} parent=31 // pred_check
        %p282 = pneg %p49
      $region34: #{tpu_custom_call.1} parent=31 // pred_check_branch
        %284 = sbr.rel (%p282) target = $region36
      $region35: #{tpu_custom_call.1} parent=31 // pred_region
        %s285 = smul.u32 8, %s23
        %p286 = scmp.lt.s32.totalorder %s22, 1
        %s287 = scalar_select %p286, %s22, 1
        %p288 = scmp.lt.s32.totalorder %s285, 15
        %s289 = scalar_select %p288, %s285, 15
        %s290 = smul.addr %s287, 16
        %s291 = sadd.s32 %s289, %s290
        %s292 = smul.addr %s291, 8
        %s293 = scalar_lea.vmem %s0, %s292
        %s294 = smul.u32 8, %s23
      $region36: #{tpu_custom_call.1} parent=31 // pred_fallthru
        _
      // Predicated region
      $region37: #{tpu_custom_call.1} parent=31 // pred_check
        %p295 = pneg %p77
      $region38: #{tpu_custom_call.1} parent=31 // pred_check_branch
        %297 = sbr.rel (%p295) target = $region40
      $region39: #{tpu_custom_call.1} parent=31 // pred_region
        %s298 = smul.u32 8, %s23
        %p299 = scmp.lt.s32.totalorder %s22, 1
        %s300 = scalar_select %p299, %s22, 1
        %p301 = scmp.lt.s32.totalorder %s298, 15
        %s302 = scalar_select %p301, %s298, 15
        %s303 = smul.addr %s300, 16
        %s304 = sadd.s32 %s302, %s303
        %s305 = smul.addr %s304, 8
        %s306 = scalar_lea.vmem %s1, %s305
        %s307 = smul.u32 8, %s23
      $region40: #{tpu_custom_call.1} parent=31 // pred_fallthru
        _
    $region32: #{tpu_custom_call.1} parent=5 // pred_fallthru
      _
    %p308 = scmp.le.s32.totalorder 1, %s15
    %p309 = scmp.lt.s32.totalorder %s15, 5
    %p310 = pnand %p308, %p309
    %p311 = pneg %p310
    // Predicated region
    $region41: #{tpu_custom_call.1} parent=5 // pred_check
      _
    $region42: #{tpu_custom_call.1} parent=5 // pred_check_branch
      %313 = sbr.rel (%p310) target = $region44
    $region43: #{tpu_custom_call.1} parent=5 // pred_region
      %s314 = ssub.s32 %s15, 1
      %s315 = smul.u32 8, %s25
      %p316 = scmp.lt.s32.totalorder %s24, 1
      %s317 = scalar_select %p316, %s24, 1
      %p318 = scmp.lt.s32.totalorder %s315, 15
      %s319 = scalar_select %p318, %s315, 15
      %s320 = smul.addr %s317, 16
      %s321 = sadd.s32 %s319, %s320
      %s322 = smul.addr %s321, 8
      %s323 = scalar_lea.vmem %s0, %s322
      %p324 = pneg %p55
      %p325 = pneg %p52
      %s326 = smul.u32 8, %s25
      %p327 = scmp.lt.s32.totalorder %s24, 1
      %s328 = scalar_select %p327, %s24, 1
      %p329 = scmp.lt.s32.totalorder %s326, 15
      %s330 = scalar_select %p329, %s326, 15
      %s331 = smul.addr %s328, 16
      %s332 = sadd.s32 %s330, %s331
      %s333 = smul.addr %s332, 8
      %s334 = scalar_lea.vmem %s1, %s333
      %p335 = pneg %p83
      %p336 = pneg %p80
      %p337 = pneg %p104
      %p338 = pneg %p101
      %p339 = pneg %p125
      %p340 = pneg %p122
      %p341 = pneg %p146
      %p342 = pneg %p143
      %p343 = pneg %p167
      %p344 = pneg %p164
      %p345 = pneg %p195
      %p346 = pneg %p192
      %s347 = smul.u32 8, %s25
      %p348 = scmp.lt.s32.totalorder %s24, 1
      %s349 = scalar_select %p348, %s24, 1
      %p350 = scmp.lt.s32.totalorder %s347, 15
      %s351 = scalar_select %p350, %s347, 15
      %s352 = smul.addr %s349, 16
      %s353 = sadd.s32 %s351, %s352
      %s354 = smul.addr %s353, 4
      %s355 = scalar_lea.vmem %s6, %s354
      %p356 = pneg %p223
      %p357 = pneg %p220
      %s358 = smul.u32 8, %s25
      %p359 = scmp.lt.s32.totalorder %s24, 1
      %s360 = scalar_select %p359, %s24, 1
      %p361 = scmp.lt.s32.totalorder %s358, 15
      %s362 = scalar_select %p361, %s358, 15
      %s363 = smul.addr %s360, 16
      %s364 = sadd.s32 %s362, %s363
      %s365 = smul.addr %s364, 4
      %s366 = scalar_lea.vmem %s7, %s365
      %p367 = pneg %p251
      %p368 = pneg %p248
      %s369 = smul.u32 8, %s25
      %p370 = scmp.lt.s32.totalorder %s24, 1
      %s371 = scalar_select %p370, %s24, 1
      %p372 = scmp.lt.s32.totalorder %s369, 15
      %s373 = scalar_select %p372, %s369, 15
      %s374 = smul.addr %s371, 16
      %s375 = sadd.s32 %s373, %s374
      %s376 = smul.addr %s375, 4
      %s377 = scalar_lea.vmem %s8, %s376
      %s378 = smul.u32 8, %s25
      %p379 = scmp.lt.s32.totalorder %s24, 1
      %s380 = scalar_select %p379, %s24, 1
      %p381 = scmp.lt.s32.totalorder %s378, 15
      %s382 = scalar_select %p381, %s378, 15
      %s383 = smul.addr %s380, 16
      %s384 = sadd.s32 %s382, %s383
      %s385 = smul.addr %s384, 8
      %s386 = scalar_lea.vmem %s0, %s385
      %s387 = smul.u32 8, %s25
      %s388 = smul.u32 8, %s25
      %p389 = scmp.lt.s32.totalorder %s24, 1
      %s390 = scalar_select %p389, %s24, 1
      %p391 = scmp.lt.s32.totalorder %s388, 15
      %s392 = scalar_select %p391, %s388, 15
      %s393 = smul.addr %s390, 16
      %s394 = sadd.s32 %s392, %s393
      %s395 = smul.addr %s394, 8
      %s396 = scalar_lea.vmem %s1, %s395
      %s397 = smul.u32 8, %s25
      %s398 = smul.u32 8, %s25
      %p399 = scmp.lt.s32.totalorder %s24, 1
      %s400 = scalar_select %p399, %s24, 1
      %p401 = scmp.lt.s32.totalorder %s398, 15
      %s402 = scalar_select %p401, %s398, 15
      %s403 = smul.addr %s400, 16
      %s404 = sadd.s32 %s402, %s403
      %s405 = smul.addr %s404, 4
      %s406 = scalar_lea.vmem %s6, %s405
      %s407 = smul.u32 8, %s25
      %s408 = smul.u32 8, %s25
      %p409 = scmp.lt.s32.totalorder %s24, 1
      %s410 = scalar_select %p409, %s24, 1
      %p411 = scmp.lt.s32.totalorder %s408, 15
      %s412 = scalar_select %p411, %s408, 15
      %s413 = smul.addr %s410, 16
      %s414 = sadd.s32 %s412, %s413
      %s415 = smul.addr %s414, 4
      %s416 = scalar_lea.vmem %s7, %s415
      %s417 = smul.u32 8, %s25
      %s418 = smul.u32 8, %s25
      %p419 = scmp.lt.s32.totalorder %s24, 1
      %s420 = scalar_select %p419, %s24, 1
      %p421 = scmp.lt.s32.totalorder %s418, 15
      %s422 = scalar_select %p421, %s418, 15
      %s423 = smul.addr %s420, 16
      %s424 = sadd.s32 %s422, %s423
      %s425 = smul.addr %s424, 4
      %s426 = scalar_lea.vmem %s8, %s425
      %s427 = smul.u32 8, %s25
      %v429 = vld [vmem:[%s386] sm:$0xff]
      %v430 = vld [vmem:[%s386 + $0x8] sm:$0xff]
      %v431 = vld [vmem:[%s386 + $0x10] sm:$0xff]
      %v432 = vld [vmem:[%s386 + $0x18] sm:$0xff]
      %v433 = vld [vmem:[%s386 + $0x20] sm:$0xff]
      %v434 = vld [vmem:[%s386 + $0x28] sm:$0xff]
      %v435 = vld [vmem:[%s386 + $0x30] sm:$0xff]
      %v436 = vld [vmem:[%s386 + $0x38] sm:$0xff]
      %v437 = vpack.c.bf16 %v430, %v429
      %v438 = vpack.c.bf16 %v432, %v431
      %v439 = vpack.c.bf16 %v434, %v433
      %v440 = vpack.c.bf16 %v436, %v435
      %v441 = vld [vmem:[%s396] sm:$0xff]
      %v442 = vld [vmem:[%s396 + $0x8] sm:$0xff]
      %v443 = vld [vmem:[%s396 + $0x10] sm:$0xff]
      %v444 = vld [vmem:[%s396 + $0x18] sm:$0xff]
      %v445 = vld [vmem:[%s396 + $0x20] sm:$0xff]
      %v446 = vld [vmem:[%s396 + $0x28] sm:$0xff]
      %v447 = vld [vmem:[%s396 + $0x30] sm:$0xff]
      %v448 = vld [vmem:[%s396 + $0x38] sm:$0xff]
      %v449 = vpack.c.bf16 %v442, %v441
      %v450 = vpack.c.bf16 %v444, %v443
      %v451 = vpack.c.bf16 %v446, %v445
      %v452 = vpack.c.bf16 %v448, %v447
      %v453 = vld [vmem:[%s2] sm:$0x3]
      %v454 = vld [vmem:[%s3] sm:$0x1]
      %v456 = vlaneseq
      %v457 = vshrl.u32 %v456, 7
      %v458 = vsub.s32 0, %v457
      %v459 = vrot.slane %v454, %v458
      %vm461 = vcmask 31744
      %v463 = vsel %vm461, %v437, 0
      %v466 = vsel %vm461, %v438, 0
      %v469 = vsel %vm461, %v439, 0
      %v472 = vsel %vm461, %v440, 0
      %vm474 = vcmask 1041408
      %v476 = vsel %vm474, %v453, 0
      %478 = vmatprep.subr.bf16.mxu0 0
      %479 = vmatpush1.bf16.msra.mxu0 %v476
      %480 = vmatprep.subr.bf16.mxu0 0
      %481 = vmatpush1.bf16.msra.mxu0 0
      %482 = vmatprep.subr.bf16.mxu0 0
      %483 = vmatpush1.bf16.msra.mxu0 0
      %484 = vmatprep.subr.bf16.mxu0 0
      %485 = vmatpush1.bf16.msra.mxu0 0
      %486 = vmatprep.subr.bf16.mxu0 0
      %487 = vmatpush1.bf16.msra.mxu0 0
      %488 = vmatprep.subr.bf16.mxu0 0
      %489 = vmatpush1.bf16.msra.mxu0 0
      %490 = vmatprep.subr.bf16.mxu0 0
      %491 = vmatpush1.bf16.msra.mxu0 0
      %492 = vmatprep.subr.bf16.mxu0 0
      %493 = vmatpush1.bf16.msra.mxu0 0
      %494 = vmatprep.subr.bf16.mxu0 0
      %495 = vmatpush1.bf16.msra.mxu0 0
      %496 = vmatprep.subr.bf16.mxu0 0
      %497 = vmatpush1.bf16.msra.mxu0 0
      %498 = vmatprep.subr.bf16.mxu0 0
      %499 = vmatpush1.bf16.msra.mxu0 0
      %500 = vmatprep.subr.bf16.mxu0 0
      %501 = vmatpush1.bf16.msra.mxu0 0
      %502 = vmatprep.subr.bf16.mxu0 0
      %503 = vmatpush1.bf16.msra.mxu0 0
      %504 = vmatprep.subr.bf16.mxu0 0
      %505 = vmatpush1.bf16.msra.mxu0 0
      %506 = vmatprep.subr.bf16.mxu0 0
      %507 = vmatpush1.bf16.msra.mxu0 0
      %508 = vmatprep.subr.bf16.mxu0 0
      %509 = vmatpush1.bf16.msra.mxu0 0
      %510 = vmatprep.mubr.bf16.mxu0 0
      %511 = vmatmul.mubr.bf16.gmra.mrb[0].mxu0 %v463
      %v512 = vpop.f32.mrb[0].mxu0
      %v513 = vadd.f32 %v459, %v512
      %v514 = vpop.f32.mrb[0].mxu0
      %v515 = vpop.f32.mrb[0].mxu0
      %v516 = vadd.f32 %v459, %v515
      %v517 = vpop.f32.mrb[0].mxu0
      %518 = vmatprep.mubr.bf16.mxu0 0
      %519 = vmatmul.mubr.bf16.gmra.mrb[0].mxu0 %v466
      %v520 = vpop.f32.mrb[0].mxu0
      %v521 = vadd.f32 %v459, %v520
      %v522 = vpop.f32.mrb[0].mxu0
      %v523 = vpop.f32.mrb[0].mxu0
      %v524 = vadd.f32 %v459, %v523
      %v525 = vpop.f32.mrb[0].mxu0
      %526 = vmatprep.mubr.bf16.mxu0 0
      %527 = vmatmul.mubr.bf16.gmra.mrb[0].mxu0 %v469
      %v528 = vpop.f32.mrb[0].mxu0
      %v529 = vadd.f32 %v459, %v528
      %v530 = vpop.f32.mrb[0].mxu0
      %v531 = vpop.f32.mrb[0].mxu0
      %v532 = vadd.f32 %v459, %v531
      %v533 = vpop.f32.mrb[0].mxu0
      %534 = vmatprep.mubr.bf16.mxu0 0
      %535 = vmatmul.mubr.bf16.gmra.mrb[0].mxu0 %v472
      %v536 = vpop.f32.mrb[0].mxu0
      %v537 = vadd.f32 %v459, %v536
      %v538 = vpop.f32.mrb[0].mxu0
      %v539 = vpop.f32.mrb[0].mxu0
      %v540 = vadd.f32 %v459, %v539
      %v541 = vpop.f32.mrb[0].mxu0
      %542 = vdwg.mxu0
      %v543 = vld [vmem:[%s4] sm:$0x3]
      %v544 = vld [vmem:[%s5] sm:$0x1]
      %v546 = vlaneseq
      %v547 = vshrl.u32 %v546, 7
      %v548 = vsub.s32 0, %v547
      %v549 = vrot.slane %v544, %v548
      %v552 = vsel %vm461, %v449, 0
      %v555 = vsel %vm461, %v450, 0
      %v558 = vsel %vm461, %v451, 0
      %v561 = vsel %vm461, %v452, 0
      %v564 = vsel %vm474, %v543, 0
      %566 = vmatprep.subr.bf16.mxu0 0
      %567 = vmatpush1.bf16.msra.mxu0 %v564
      %568 = vmatprep.subr.bf16.mxu0 0
      %569 = vmatpush1.bf16.msra.mxu0 0
      %570 = vmatprep.subr.bf16.mxu0 0
      %571 = vmatpush1.bf16.msra.mxu0 0
      %572 = vmatprep.subr.bf16.mxu0 0
      %573 = vmatpush1.bf16.msra.mxu0 0
      %574 = vmatprep.subr.bf16.mxu0 0
      %575 = vmatpush1.bf16.msra.mxu0 0
      %576 = vmatprep.subr.bf16.mxu0 0
      %577 = vmatpush1.bf16.msra.mxu0 0
      %578 = vmatprep.subr.bf16.mxu0 0
      %579 = vmatpush1.bf16.msra.mxu0 0
      %580 = vmatprep.subr.bf16.mxu0 0
      %581 = vmatpush1.bf16.msra.mxu0 0
      %582 = vmatprep.subr.bf16.mxu0 0
      %583 = vmatpush1.bf16.msra.mxu0 0
      %584 = vmatprep.subr.bf16.mxu0 0
      %585 = vmatpush1.bf16.msra.mxu0 0
      %586 = vmatprep.subr.bf16.mxu0 0
      %587 = vmatpush1.bf16.msra.mxu0 0
      %588 = vmatprep.subr.bf16.mxu0 0
      %589 = vmatpush1.bf16.msra.mxu0 0
      %590 = vmatprep.subr.bf16.mxu0 0
      %591 = vmatpush1.bf16.msra.mxu0 0
      %592 = vmatprep.subr.bf16.mxu0 0
      %593 = vmatpush1.bf16.msra.mxu0 0
      %594 = vmatprep.subr.bf16.mxu0 0
      %595 = vmatpush1.bf16.msra.mxu0 0
      %596 = vmatprep.subr.bf16.mxu0 0
      %597 = vmatpush1.bf16.msra.mxu0 0
      %598 = vmatprep.mubr.bf16.mxu0 0
      %599 = vmatmul.mubr.bf16.gmra.mrb[0].mxu0 %v552
      %v600 = vpop.f32.mrb[0].mxu0
      %v601 = vadd.f32 %v549, %v600
      %v602 = vpop.f32.mrb[0].mxu0
      %v603 = vpop.f32.mrb[0].mxu0
      %v604 = vadd.f32 %v549, %v603
      %v605 = vpop.f32.mrb[0].mxu0
      %606 = vmatprep.mubr.bf16.mxu0 0
      %607 = vmatmul.mubr.bf16.gmra.mrb[0].mxu0 %v555
      %v608 = vpop.f32.mrb[0].mxu0
      %v609 = vadd.f32 %v549, %v608
      %v610 = vpop.f32.mrb[0].mxu0
      %v611 = vpop.f32.mrb[0].mxu0
      %v612 = vadd.f32 %v549, %v611
      %v613 = vpop.f32.mrb[0].mxu0
      %614 = vmatprep.mubr.bf16.mxu0 0
      %615 = vmatmul.mubr.bf16.gmra.mrb[0].mxu0 %v558
      %v616 = vpop.f32.mrb[0].mxu0
      %v617 = vadd.f32 %v549, %v616
      %v618 = vpop.f32.mrb[0].mxu0
      %v619 = vpop.f32.mrb[0].mxu0
      %v620 = vadd.f32 %v549, %v619
      %v621 = vpop.f32.mrb[0].mxu0
      %622 = vmatprep.mubr.bf16.mxu0 0
      %623 = vmatmul.mubr.bf16.gmra.mrb[0].mxu0 %v561
      %v624 = vpop.f32.mrb[0].mxu0
      %v625 = vadd.f32 %v549, %v624
      %v626 = vpop.f32.mrb[0].mxu0
      %v627 = vpop.f32.mrb[0].mxu0
      %v628 = vadd.f32 %v549, %v627
      %v629 = vpop.f32.mrb[0].mxu0
      %630 = vdwg.mxu0
      %v631 = vpack.c.bf16 %v516, %v513
      %v632 = vpack.c.bf16 %v524, %v521
      %v633 = vpack.c.bf16 %v532, %v529
      %v634 = vpack.c.bf16 %v540, %v537
      %v639 = vunpack.c.l.b16 %v631
      %v640 = vunpack.c.h.b16 %v631
      %v641 = vunpack.c.l.b16 %v632
      %v642 = vunpack.c.h.b16 %v632
      %v643 = vunpack.c.l.b16 %v633
      %v644 = vunpack.c.h.b16 %v633
      %v645 = vunpack.c.l.b16 %v634
      %v646 = vunpack.c.h.b16 %v634
      %v647 = vpack.c.b16 %v639, %v639
      %v648 = vpack.c.b16 %v640, %v640
      %v649 = vpack.c.b16 %v641, %v641
      %v650 = vpack.c.b16 %v642, %v642
      %v651 = vpack.c.b16 %v643, %v643
      %v652 = vpack.c.b16 %v644, %v644
      %v653 = vpack.c.b16 %v645, %v645
      %v654 = vpack.c.b16 %v646, %v646
      %vm663 = vcmask 11264
      %664 = vst.msk [vmem:[%s416] sm:$0xf] %vm663, %v647
      %665 = vst.msk [vmem:[%s416 + $0x4] sm:$0xf] %vm663, %v648
      %666 = vst.msk [vmem:[%s416 + $0x8] sm:$0xf] %vm663, %v649
      %667 = vst.msk [vmem:[%s416 + $0xc] sm:$0xf] %vm663, %v650
      %668 = vst.msk [vmem:[%s416 + $0x10] sm:$0xf] %vm663, %v651
      %669 = vst.msk [vmem:[%s416 + $0x14] sm:$0xf] %vm663, %v652
      %670 = vst.msk [vmem:[%s416 + $0x18] sm:$0xf] %vm663, %v653
      %671 = vst.msk [vmem:[%s416 + $0x1c] sm:$0xf] %vm663, %v654
      %672 = vrot.lane.b32.xlu0 %v647, 126
      %v673 = vpop.permute.xlu0 %672
      %674 = vrot.lane.b32.xlu0 %v648, 126
      %v675 = vpop.permute.xlu0 %674
      %676 = vrot.lane.b32.xlu0 %v649, 126
      %v677 = vpop.permute.xlu0 %676
      %678 = vrot.lane.b32.xlu0 %v650, 126
      %v679 = vpop.permute.xlu0 %678
      %680 = vrot.lane.b32.xlu0 %v651, 126
      %v681 = vpop.permute.xlu0 %680
      %682 = vrot.lane.b32.xlu0 %v652, 126
      %v683 = vpop.permute.xlu0 %682
      %684 = vrot.lane.b32.xlu0 %v653, 126
      %v685 = vpop.permute.xlu0 %684
      %686 = vrot.lane.b32.xlu0 %v654, 126
      %v687 = vpop.permute.xlu0 %686
      %696 = vst.msk [vmem:[%s426] sm:$0xf] %vm663, %v673
      %697 = vst.msk [vmem:[%s426 + $0x4] sm:$0xf] %vm663, %v675
      %698 = vst.msk [vmem:[%s426 + $0x8] sm:$0xf] %vm663, %v677
      %699 = vst.msk [vmem:[%s426 + $0xc] sm:$0xf] %vm663, %v679
      %700 = vst.msk [vmem:[%s426 + $0x10] sm:$0xf] %vm663, %v681
      %701 = vst.msk [vmem:[%s426 + $0x14] sm:$0xf] %vm663, %v683
      %702 = vst.msk [vmem:[%s426 + $0x18] sm:$0xf] %vm663, %v685
      %703 = vst.msk [vmem:[%s426 + $0x1c] sm:$0xf] %vm663, %v687
      %v704 = vpack.c.bf16 %v604, %v601
      %v705 = vpack.c.bf16 %v612, %v609
      %v706 = vpack.c.bf16 %v620, %v617
      %v707 = vpack.c.bf16 %v628, %v625
      %v712 = vunpack.c.l.b16 %v704
      %v713 = vunpack.c.h.b16 %v704
      %v714 = vunpack.c.l.b16 %v705
      %v715 = vunpack.c.h.b16 %v705
      %v716 = vunpack.c.l.b16 %v706
      %v717 = vunpack.c.h.b16 %v706
      %v718 = vunpack.c.l.b16 %v707
      %v719 = vunpack.c.h.b16 %v707
      %v720 = vpack.c.b16 %v712, %v712
      %v721 = vpack.c.b16 %v713, %v713
      %v722 = vpack.c.b16 %v714, %v714
      %v723 = vpack.c.b16 %v715, %v715
      %v724 = vpack.c.b16 %v716, %v716
      %v725 = vpack.c.b16 %v717, %v717
      %v726 = vpack.c.b16 %v718, %v718
      %v727 = vpack.c.b16 %v719, %v719
      %736 = vst.msk [vmem:[%s406] sm:$0xf] %vm663, %v720
      %737 = vst.msk [vmem:[%s406 + $0x4] sm:$0xf] %vm663, %v721
      %738 = vst.msk [vmem:[%s406 + $0x8] sm:$0xf] %vm663, %v722
      %739 = vst.msk [vmem:[%s406 + $0xc] sm:$0xf] %vm663, %v723
      %740 = vst.msk [vmem:[%s406 + $0x10] sm:$0xf] %vm663, %v724
      %741 = vst.msk [vmem:[%s406 + $0x14] sm:$0xf] %vm663, %v725
      %742 = vst.msk [vmem:[%s406 + $0x18] sm:$0xf] %vm663, %v726
      %743 = vst.msk [vmem:[%s406 + $0x1c] sm:$0xf] %vm663, %v727
      %s744 = smul.u32 8, %s25
      %p745 = scmp.lt.s32.totalorder %s24, 1
      %s746 = scalar_select %p745, %s24, 1
      %p747 = scmp.lt.s32.totalorder %s744, 15
      %s748 = scalar_select %p747, %s744, 15
      %s749 = smul.addr %s746, 16
      %s750 = sadd.s32 %s748, %s749
      %s751 = smul.addr %s750, 4
      %s752 = scalar_lea.vmem %s6, %s751
      %s753 = smul.u32 8, %s25
      %p754 = scmp.lt.s32.totalorder %s24, 1
      %s755 = scalar_select %p754, %s24, 1
      %p756 = scmp.lt.s32.totalorder %s753, 15
      %s757 = scalar_select %p756, %s753, 15
      %s758 = smul.addr %s755, 16
      %s759 = sadd.s32 %s757, %s758
      %s760 = smul.addr %s759, 4
      %s761 = scalar_lea.vmem %s7, %s760
      %s762 = smul.u32 8, %s25
      %p763 = scmp.lt.s32.totalorder %s24, 1
      %s764 = scalar_select %p763, %s24, 1
      %p765 = scmp.lt.s32.totalorder %s762, 15
      %s766 = scalar_select %p765, %s762, 15
      %s767 = smul.addr %s764, 16
      %s768 = sadd.s32 %s766, %s767
      %s769 = smul.addr %s768, 4
      %s770 = scalar_lea.vmem %s8, %s769
      // Predicated region
      $region45: #{tpu_custom_call.1} parent=43 // pred_check
        %p771 = pneg %p192
      $region46: #{tpu_custom_call.1} parent=43 // pred_check_branch
        %773 = sbr.rel (%p771) target = $region48
      $region47: #{tpu_custom_call.1} parent=43 // pred_region
        %s774 = smul.u32 8, %s25
      $region48: #{tpu_custom_call.1} parent=43 // pred_fallthru
        _
      // Predicated region
      $region49: #{tpu_custom_call.1} parent=43 // pred_check
        %p775 = pneg %p220
      $region50: #{tpu_custom_call.1} parent=43 // pred_check_branch
        %777 = sbr.rel (%p775) target = $region52
      $region51: #{tpu_custom_call.1} parent=43 // pred_region
        %s778 = smul.u32 8, %s25
      $region52: #{tpu_custom_call.1} parent=43 // pred_fallthru
        _
      // Predicated region
      $region53: #{tpu_custom_call.1} parent=43 // pred_check
        %p779 = pneg %p248
      $region54: #{tpu_custom_call.1} parent=43 // pred_check_branch
        %781 = sbr.rel (%p779) target = $region56
      $region55: #{tpu_custom_call.1} parent=43 // pred_region
        %s782 = smul.u32 8, %s25
      $region56: #{tpu_custom_call.1} parent=43 // pred_fallthru
        _
    $region44: #{tpu_custom_call.1} parent=5 // pred_fallthru
      _
    %p783 = scmp.le.s32.totalorder 2, %s15
    // Predicated region
    $region57: #{tpu_custom_call.1} parent=5 // pred_check
      %p784 = pneg %p783
    $region58: #{tpu_custom_call.1} parent=5 // pred_check_branch
      %786 = sbr.rel (%p784) target = $region60
    $region59: #{tpu_custom_call.1} parent=5 // pred_region
      %s787 = ssub.s32 %s15, 2
      // Predicated region
      $region61: #{tpu_custom_call.1} parent=59 // pred_check
        %p788 = pneg %p198
      $region62: #{tpu_custom_call.1} parent=59 // pred_check_branch
        %790 = sbr.rel (%p788) target = $region64
      $region63: #{tpu_custom_call.1} parent=59 // pred_region
        %s791 = smul.u32 8, %s27
        %p792 = scmp.lt.s32.totalorder %s26, 1
        %s793 = scalar_select %p792, %s26, 1
        %p794 = scmp.lt.s32.totalorder %s791, 15
        %s795 = scalar_select %p794, %s791, 15
        %s796 = smul.addr %s793, 16
        %s797 = sadd.s32 %s795, %s796
        %s798 = smul.addr %s797, 4
        %s799 = scalar_lea.vmem %s6, %s798
      $region64: #{tpu_custom_call.1} parent=59 // pred_fallthru
        _
      // Predicated region
      $region65: #{tpu_custom_call.1} parent=59 // pred_check
        %p800 = pneg %p226
      $region66: #{tpu_custom_call.1} parent=59 // pred_check_branch
        %802 = sbr.rel (%p800) target = $region68
      $region67: #{tpu_custom_call.1} parent=59 // pred_region
        %s803 = smul.u32 8, %s27
        %p804 = scmp.lt.s32.totalorder %s26, 1
        %s805 = scalar_select %p804, %s26, 1
        %p806 = scmp.lt.s32.totalorder %s803, 15
        %s807 = scalar_select %p806, %s803, 15
        %s808 = smul.addr %s805, 16
        %s809 = sadd.s32 %s807, %s808
        %s810 = smul.addr %s809, 4
        %s811 = scalar_lea.vmem %s7, %s810
      $region68: #{tpu_custom_call.1} parent=59 // pred_fallthru
        _
      // Predicated region
      $region69: #{tpu_custom_call.1} parent=59 // pred_check
        %p812 = pneg %p254
      $region70: #{tpu_custom_call.1} parent=59 // pred_check_branch
        %814 = sbr.rel (%p812) target = $region72
      $region71: #{tpu_custom_call.1} parent=59 // pred_region
        %s815 = smul.u32 8, %s27
        %p816 = scmp.lt.s32.totalorder %s26, 1
        %s817 = scalar_select %p816, %s26, 1
        %p818 = scmp.lt.s32.totalorder %s815, 15
        %s819 = scalar_select %p818, %s815, 15
        %s820 = smul.addr %s817, 16
        %s821 = sadd.s32 %s819, %s820
        %s822 = smul.addr %s821, 4
        %s823 = scalar_lea.vmem %s8, %s822
      $region72: #{tpu_custom_call.1} parent=59 // pred_fallthru
        _
    $region60: #{tpu_custom_call.1} parent=5 // pred_fallthru
      _
  $region6: #{tpu_custom_call.1} parent=0 // loop_footer
    %s19 = sadd.s32 1, %s15
  $region7: #{tpu_custom_call.1} parent=0 // loop_footer_branch
    %14 = sbr.rel target = $region3
  $region8: #{tpu_custom_call.1} parent=0 // loop_exit
    _

</llo_original>
